<compile_context>
chip_gen: v6e
topology: v6e:2x2x1
jax: 0.10.0
libtpu: 0.0.40
codegen_flags: <defaults>
</compile_context>

<pallas_src>
import jax
import jax.numpy as jnp
from jax.experimental import pallas as pl
from jax.experimental.pallas import tpu as pltpu


PACK = 8  # logical rows packed per lane-dense VMEM row (16 feats * 8 = 128 lanes)


def _round_up(x, m):
    return ((x + m - 1) // m) * m


def _linear_kernel(x_ref, w_ref, b_ref, o_ref):
    # x_ref: (tile_np, 128) stream dtype        (8 logical rows per packed row)
    # w_ref: (128, 56) stream dtype             (kron(I_8, W.T), block-diagonal)
    # b_ref: (1, 56) f32                        (bias tiled 8x)
    # o_ref: (tile_np, 56) out dtype
    acc = jnp.dot(x_ref[...], w_ref[...], preferred_element_type=jnp.float32)
    o_ref[...] = (acc + b_ref[...]).astype(o_ref.dtype)


def logistic_forward(x, weight, bias, *, tile_n=16384, out_dtype=jnp.float32,
                     stream_dtype=None, min_grid_steps=2):
    """Forward of `Logistic` (nn.Linear(16, 7)): returns x @ weight.T + bias.

    x: (N, 16), weight: (7, 16) (PyTorch layout), bias: (7,).
    stream_dtype=None (default) streams X in its own dtype — no extra HBM pass.
    out_dtype controls the output dtype (f32 default = faithful to the module).
    """
    n, in_f = x.shape
    out_f = weight.shape[0]

    # Pad batch to a multiple of PACK so (N,16) -> (N/8,128) is a free
    # contiguous row-major view. Pad rows are computed and sliced off.
    n_pad = _round_up(n, PACK)
    if n_pad != n:
        x = jnp.pad(x, ((0, n_pad - n), (0, 0)))
    packed_rows = n_pad // PACK
    packed_k = PACK * in_f       # 128 lanes: exactly one vreg-width of features
    packed_out = PACK * out_f    # 56 lanes

    if stream_dtype is None:
        stream_dtype = x.dtype   # default: no wrapper-side cast / extra HBM pass

    # Free view of X; tiny constant blocks for W and bias.
    x_p = x.astype(stream_dtype).reshape(packed_rows, packed_k)
    w_block = jnp.kron(jnp.eye(PACK, dtype=jnp.float32),
                       weight.T.astype(jnp.float32)).astype(stream_dtype)  # (128, 56)
    b_block = jnp.tile(bias.astype(jnp.float32), PACK).reshape(1, packed_out)

    # Tile over packed rows. Keep >= min_grid_steps grid steps when there is
    # enough work (v7x megacore), and tile_np a multiple of 8 unless full.
    tile_np = min(max(tile_n // PACK, 1), packed_rows)
    if packed_rows >= min_grid_steps * 8:
        tile_np = min(tile_np, pl.cdiv(packed_rows, min_grid_steps))
    if tile_np < packed_rows:
        tile_np = max(8, (tile_np // 8) * 8)
        tile_np = min(tile_np, packed_rows)
    grid = (pl.cdiv(packed_rows, tile_np),)

    out_p = pl.pallas_call(
        _linear_kernel,
        out_shape=jax.ShapeDtypeStruct((packed_rows, packed_out), out_dtype),
        grid=grid,
        in_specs=[
            pl.BlockSpec((tile_np, packed_k), lambda i: (i, 0)),      # streamed X
            pl.BlockSpec((packed_k, packed_out), lambda i: (0, 0)),   # constant W'
            pl.BlockSpec((1, packed_out), lambda i: (0, 0)),          # constant bias
        ],
        out_specs=pl.BlockSpec((tile_np, packed_out), lambda i: (i, 0)),
        compiler_params=pltpu.CompilerParams(
            dimension_semantics=("parallel",),   # rows independent -> megacore split
        ),
    )(x_p, w_block, b_block)

    out = out_p.reshape(n_pad, out_f)
    return out[:n] if n_pad != n else out


if __name__ == "__main__":
    key = jax.random.PRNGKey(0)
    k_x, k_w, k_b = jax.random.split(key, 3)

    IN_F, OUT_F = 16, 7

    # Deterministic synthetic parameters (PyTorch nn.Linear shapes: W (7,16), b (7,))
    bound = 1.0 / jnp.sqrt(IN_F)
    weight = jax.random.uniform(k_w, (OUT_F, IN_F), jnp.float32, -bound, bound)
    bias = jax.random.uniform(k_b, (OUT_F,), jnp.float32, -bound, bound)

    # Case 1: multi-tile aligned batch (2048 rows, 512-row tiles -> 4 grid steps).
    N1 = 2048
    x1 = jax.random.normal(k_x, (N1, IN_F), jnp.float32)
    ref1 = x1 @ weight.T + bias
    out1 = jax.block_until_ready(logistic_forward(x1, weight, bias, tile_n=512))
    assert out1.shape == (N1, OUT_F)
    assert jnp.allclose(out1, ref1, atol=1e-5, rtol=1e-5)

    # Case 2: ragged batch (not a multiple of 8), exercises pad + clipped writeback.
    N2 = 1000
    x2 = jax.random.normal(jax.random.PRNGKey(1), (N2, IN_F), jnp.float32)
    ref2 = x2 @ weight.T + bias
    out2 = jax.block_until_ready(logistic_forward(x2, weight, bias, tile_n=256))
    assert out2.shape == (N2, OUT_F)
    assert jnp.allclose(out2, ref2, atol=1e-5, rtol=1e-5)

    # Case 3: opt-in bf16 output (f32 accumulate + f32 bias add kept).
    out3 = jax.block_until_ready(
        logistic_forward(x1, weight, bias, tile_n=512, out_dtype=jnp.bfloat16))
    assert out3.shape == (N1, OUT_F) and out3.dtype == jnp.bfloat16
    assert jnp.allclose(out3.astype(jnp.float32), ref1, atol=3e-2, rtol=3e-2)

    print("KERNEL_OK")
</pallas_src>

<mosaic_0001>
module attributes {stable_mosaic.version = 11 : i64} {
  func.func @_linear_kernel(%arg0: i32, %arg1: memref<64x128xf32, #tpu.memory_space<vmem>>, %arg2: memref<128x56xf32, #tpu.memory_space<vmem>>, %arg3: memref<1x56xf32, #tpu.memory_space<vmem>>, %arg4: memref<64x56xf32, #tpu.memory_space<vmem>>) attributes {dimension_semantics = [#tpu.dimension_semantics<parallel>], iteration_bounds = array<i64: 4>, scalar_prefetch = 0 : i64, scratch_operands = 0 : i64, tpu.core_type = #tpu.core_type<tc>, window_params = [{transform_indices = @transform_0, window_bounds = array<i64: 64, 128>}, {pipeline_mode = #tpu.pipeline_mode<synchronous>, transform_indices = @transform_1, window_bounds = array<i64: 128, 56>}, {pipeline_mode = #tpu.pipeline_mode<synchronous>, transform_indices = @transform_2, window_bounds = array<i64: 1, 56>}, {transform_indices = @transform_3, window_bounds = array<i64: 64, 56>}]} {
    %c0 = arith.constant 0 : index
    %c0_0 = arith.constant 0 : index
    %0 = vector.load %arg1[%c0, %c0_0] : memref<64x128xf32, #tpu.memory_space<vmem>>, vector<64x128xf32>
    %c0_1 = arith.constant 0 : index
    %c0_2 = arith.constant 0 : index
    %1 = vector.load %arg2[%c0_1, %c0_2] : memref<128x56xf32, #tpu.memory_space<vmem>>, vector<128x56xf32>
    %cst = arith.constant dense<0.000000e+00> : vector<64x56xf32>
    %2 = tpu.matmul %0, %1, %cst {dimension_numbers = #tpu.dot_dimension_numbers<[1], [0], [0], [1], [0, 0, 1, 1], [], []>} : vector<64x128xf32>, vector<128x56xf32>, vector<64x56xf32> -> vector<64x56xf32>
    %c0_3 = arith.constant 0 : index
    %c0_4 = arith.constant 0 : index
    %3 = vector.load %arg3[%c0_3, %c0_4] : memref<1x56xf32, #tpu.memory_space<vmem>>, vector<1x56xf32>
    %4 = vector.broadcast %3 : vector<1x56xf32> to vector<64x56xf32>
    %5 = arith.addf %2, %4 : vector<64x56xf32>
    %c0_5 = arith.constant 0 : index
    %c0_6 = arith.constant 0 : index
    %6 = vector.load %arg4[%c0_5, %c0_6] : memref<64x56xf32, #tpu.memory_space<vmem>>, vector<64x56xf32>
    tpu.vector_store %arg4[%c0_5, %c0_6], %5 {strides = array<i32>} : memref<64x56xf32, #tpu.memory_space<vmem>>, vector<64x56xf32>,
    return
  }
  func.func @transform_0(%arg0: i32) -> (i32, i32) {
    %c0_i32 = arith.constant 0 : i32
    %c0_i32_0 = arith.constant 0 : i32
    return %arg0, %c0_i32 : i32, i32
  }
  func.func @transform_1(%arg0: i32) -> (i32, i32) {
    %c0_i32 = arith.constant 0 : i32
    %c0_i32_0 = arith.constant 0 : i32
    %c0_i32_1 = arith.constant 0 : i32
    return %c0_i32, %c0_i32_0 : i32, i32
  }
  func.func @transform_2(%arg0: i32) -> (i32, i32) {
    %c0_i32 = arith.constant 0 : i32
    %c0_i32_0 = arith.constant 0 : i32
    %c0_i32_1 = arith.constant 0 : i32
    return %c0_i32, %c0_i32_0 : i32, i32
  }
  func.func @transform_3(%arg0: i32) -> (i32, i32) {
    %c0_i32 = arith.constant 0 : i32
    %c0_i32_0 = arith.constant 0 : i32
    return %arg0, %c0_i32 : i32, i32
  }
}

</mosaic_0001>

<llo_original>
// kernel: tpu_custom_call.1
$region0: #{tpu_custom_call.1}
  #allocation0 [shape = 'u32[]', space=smem, size = 0x4, offset = 0x4, fixed_abs, tag = 'smem constant byte address 0x4 - core index']
  #allocation1 [shape = 'u32[144,128]{1,0:T(1,128)}', space=vmem, size = 0x12000, scoped, tag = 'internal scratch']
  %s0 = inlined_call_operand.hbm [shape: f32[256,128], index: 0, kind: input, shape index: {}]
  %s1 = inlined_call_operand.vmem [shape: f32[128,56], index: 1, kind: input, shape index: {}]
  %s2 = inlined_call_operand.vmem [shape: f32[1,56], index: 2, kind: input, shape index: {}]
  %s3 = inlined_call_operand.vmem [shape: f32[256,56], index: 3, kind: output, shape index: {}]
  %s4 = sld [smem:[#allocation0]]
  $region49: #{tpu_custom_call.1} parent=0
    _
  %s6 = ssub.s32 1, %s4
  %s7 = scalar_select 0, %s6, %s4
  $region1: #{tpu_custom_call.1} parent=0
    #allocation2 [shape = 'u8[65536]{0}', space=vmem, size = 0x10000, scoped, tag = 'input window, operand 0']
    #allocation3 [shape = 's32[2]{0}', space=sflag, size = 0x8, scoped, tag = 'scoped memory for tpu_custom_call.1']
    %8 = vsyncpa [#allocation3], 0
    %s9 = scalar_lea.sflag [#allocation3], 1
    %10 = vsyncpa %s9, 0
    loop: start=0, step=1, limit=6
    $region2: #{tpu_custom_call.1} parent=1 // loop_pre_header
      _
    $region3: #{tpu_custom_call.1} parent=1 // loop_header
      %s12 = sphi 0, %s16
      %p13 = scmp.ge.s32.totalorder %s12, 6
      %s22 = sphi 0, %s24
      %s25 = sphi 0, %s22
      %s26 = sphi 0, %s25
      %s42 = sphi 0, %s26
      %s46 = sphi 0, %s46
      %s48 = sphi 0, %s46
      %s49 = sphi 0, %s48
      %s63 = sphi 0, %s49
      %s67 = sphi 0, %s67
      %s69 = sphi 0, %s67
      %s70 = sphi 0, %s69
      %s84 = sphi 0, %s70
      %s90 = sphi 0, %s92
      %s93 = sphi 0, %s90
      %s94 = sphi 0, %s93
      %s110 = sphi 0, %s94
    $region4: #{tpu_custom_call.1} parent=1 // loop_header_branch
      %15 = sbr.rel (%p13) target = $region8
    $region5: #{tpu_custom_call.1} parent=1 // loop_body
      %s17 = ssub.s32 %s12, 1
      %s18 = ssub.s32 %s12, 2
      %s19 = sadd.s32 %s12, 1
      %s20 = ssub.s32 %s12, %s19
      %p21 = scmp.eq.s32.totalorder %s20, 0
      %s23 = sadd.s32 %s22, 1
      %s24 = scalar_select %p21, %s22, %s23
      %p27 = pneg %p21
      %p28 = scmp.eq.s32.totalorder %s12, 3
      %p29 = por %p27, %p28
      %p30 = scmp.ne.s32.totalorder %s22, %s25
      %p31 = scmp.eq.s32.totalorder %s12, 0
      %p32 = por %p30, %p31
      %p33 = scmp.ne.s32.totalorder %s22, %s25
      %p34 = scmp.eq.s32.totalorder %s17, 3
      %p35 = por %p33, %p34
      %p36 = scmp.ne.s32.totalorder %s25, %s26
      %p37 = scmp.eq.s32.totalorder %s17, 0
      %p38 = por %p36, %p37
      %p39 = scmp.ne.s32.totalorder %s25, %s26
      %p40 = scmp.eq.s32.totalorder %s18, 3
      %p41 = por %p39, %p40
      %p43 = scmp.ne.s32.totalorder %s26, %s42
      %p44 = scmp.eq.s32.totalorder %s18, 0
      %p45 = por %p43, %p44
      %s47 = sadd.s32 %s46, 1
      %p50 = scmp.eq.s32.totalorder %s12, 3
      %p51 = scmp.ne.s32.totalorder %s46, %s48
      %p52 = scmp.eq.s32.totalorder %s12, 0
      %p53 = por %p51, %p52
      %p54 = scmp.ne.s32.totalorder %s46, %s48
      %p55 = scmp.eq.s32.totalorder %s17, 3
      %p56 = por %p54, %p55
      %p57 = scmp.ne.s32.totalorder %s48, %s49
      %p58 = scmp.eq.s32.totalorder %s17, 0
      %p59 = por %p57, %p58
      %p60 = scmp.ne.s32.totalorder %s48, %s49
      %p61 = scmp.eq.s32.totalorder %s18, 3
      %p62 = por %p60, %p61
      %p64 = scmp.ne.s32.totalorder %s49, %s63
      %p65 = scmp.eq.s32.totalorder %s18, 0
      %p66 = por %p64, %p65
      %s68 = sadd.s32 %s67, 1
      %p71 = scmp.eq.s32.totalorder %s12, 3
      %p72 = scmp.ne.s32.totalorder %s67, %s69
      %p73 = scmp.eq.s32.totalorder %s12, 0
      %p74 = por %p72, %p73
      %p75 = scmp.ne.s32.totalorder %s67, %s69
      %p76 = scmp.eq.s32.totalorder %s17, 3
      %p77 = por %p75, %p76
      %p78 = scmp.ne.s32.totalorder %s69, %s70
      %p79 = scmp.eq.s32.totalorder %s17, 0
      %p80 = por %p78, %p79
      %p81 = scmp.ne.s32.totalorder %s69, %s70
      %p82 = scmp.eq.s32.totalorder %s18, 3
      %p83 = por %p81, %p82
      %p85 = scmp.ne.s32.totalorder %s70, %s84
      %p86 = scmp.eq.s32.totalorder %s18, 0
      %p87 = por %p85, %p86
      %s88 = ssub.s32 %s12, %s19
      %p89 = scmp.eq.s32.totalorder %s88, 0
      %s91 = sadd.s32 %s90, 1
      %s92 = scalar_select %p89, %s90, %s91
      %p95 = pneg %p89
      %p96 = scmp.eq.s32.totalorder %s12, 3
      %p97 = por %p95, %p96
      %p98 = scmp.ne.s32.totalorder %s90, %s93
      %p99 = scmp.eq.s32.totalorder %s12, 0
      %p100 = por %p98, %p99
      %p101 = scmp.ne.s32.totalorder %s90, %s93
      %p102 = scmp.eq.s32.totalorder %s17, 3
      %p103 = por %p101, %p102
      %p104 = scmp.ne.s32.totalorder %s93, %s94
      %p105 = scmp.eq.s32.totalorder %s17, 0
      %p106 = por %p104, %p105
      %p107 = scmp.ne.s32.totalorder %s93, %s94
      %p108 = scmp.eq.s32.totalorder %s18, 3
      %p109 = por %p107, %p108
      %p111 = scmp.ne.s32.totalorder %s94, %s110
      %p112 = scmp.eq.s32.totalorder %s18, 0
      %p113 = por %p111, %p112
      %p114 = scmp.le.s32.totalorder 1, %s12
      %p115 = scmp.lt.s32.totalorder %s12, 5
      %p116 = pnand %p114, %p115
      %p117 = pneg %p116
      // Predicated region
      $region9: #{tpu_custom_call.1} parent=5 // pred_check
        _
      $region10: #{tpu_custom_call.1} parent=5 // pred_check_branch
        %119 = sbr.rel (%p116) target = $region12
      $region11: #{tpu_custom_call.1} parent=5 // pred_region
        %s120 = ssub.s32 %s12, 1
        // Predicated region
        $region13: #{tpu_custom_call.1} parent=11 // pred_check
          %p121 = pneg %p59
        $region14: #{tpu_custom_call.1} parent=11 // pred_check_branch
          %123 = sbr.rel (%p121) target = $region16
        $region15: #{tpu_custom_call.1} parent=11 // pred_region
          _
        $region16: #{tpu_custom_call.1} parent=11 // pred_fallthru
          _
        // Predicated region
        $region17: #{tpu_custom_call.1} parent=11 // pred_check
          %p124 = pneg %p80
        $region18: #{tpu_custom_call.1} parent=11 // pred_check_branch
          %126 = sbr.rel (%p124) target = $region20
        $region19: #{tpu_custom_call.1} parent=11 // pred_region
          _
        $region20: #{tpu_custom_call.1} parent=11 // pred_fallthru
          _
      $region12: #{tpu_custom_call.1} parent=5 // pred_fallthru
        _
      %p127 = scmp.lt.s32.totalorder %s12, 4
      // Predicated region
      $region21: #{tpu_custom_call.1} parent=5 // pred_check
        %p128 = pneg %p127
      $region22: #{tpu_custom_call.1} parent=5 // pred_check_branch
        %130 = sbr.rel (%p128) target = $region24
      $region23: #{tpu_custom_call.1} parent=5 // pred_region
        // Predicated region
        $region25: #{tpu_custom_call.1} parent=23 // pred_check
          %p131 = pneg %p32
        $region26: #{tpu_custom_call.1} parent=23 // pred_check_branch
          %133 = sbr.rel (%p131) target = $region28
        $region27: #{tpu_custom_call.1} parent=23 // pred_region
          %s134 = sand.u32 %s22, 1
          %s135 = scalar_lea.sflag [#allocation3], %s134
          %s136 = sand.u32 %s22, 1
          %s137 = smul.addr %s136, 64
          %s138 = scalar_lea.vmem [#allocation2], %s137
          %s139 = smul.u32 8, %s12
          %s141 = ssub.s32 1024, 1024
          %142 = vsyncadd %s135, %s141
          %s143 = smul.addr %s139, 128
          %s144 = scalar_lea.hbm %s0, %s143
          %s145 = sshll.u32 %s138, 4
          %s146 = int_to_ptr.vmem [resolvable:$true] %s145
          %151 = dma.hbm_to_vmem [thread:$0]  %s144, 1024, %s146, %s135, 128, 128, 8
        $region28: #{tpu_custom_call.1} parent=23 // pred_fallthru
          _
      $region24: #{tpu_custom_call.1} parent=5 // pred_fallthru
        _
      %p152 = scmp.le.s32.totalorder 1, %s12
      %p153 = scmp.lt.s32.totalorder %s12, 5
      %p154 = pnand %p152, %p153
      %p155 = pneg %p154
      // Predicated region
      $region29: #{tpu_custom_call.1} parent=5 // pred_check
        _
      $region30: #{tpu_custom_call.1} parent=5 // pred_check_branch
        %157 = sbr.rel (%p154) target = $region32
      $region31: #{tpu_custom_call.1} parent=5 // pred_region
        %s158 = ssub.s32 %s12, 1
        %s159 = sand.u32 %s25, 1
        %s160 = scalar_lea.sflag [#allocation3], %s159
        %s161 = sand.u32 %s25, 1
        %s162 = smul.addr %s161, 64
        %s163 = scalar_lea.vmem [#allocation2], %s162
        // Predicated region
        $region33: #{tpu_custom_call.1} parent=31 // pred_check
          %p164 = pneg %p38
        $region34: #{tpu_custom_call.1} parent=31 // pred_check_branch
          %166 = sbr.rel (%p164) target = $region36
        $region35: #{tpu_custom_call.1} parent=31 // pred_region
          %167 = dma.done %s160, 1024
        $region36: #{tpu_custom_call.1} parent=31 // pred_fallthru
          _
        %s168 = sand.u32 %s25, 1
        %s169 = scalar_lea.sflag [#allocation3], %s168
        %s170 = sand.u32 %s25, 1
        %s171 = smul.addr %s170, 64
        %s172 = scalar_lea.vmem [#allocation2], %s171
        %p173 = pneg %p38
        %p174 = pneg %p35
        %p175 = pneg %p59
        %p176 = pneg %p56
        %p177 = pneg %p80
        %p178 = pneg %p77
        %p179 = pneg %p106
        %p180 = pneg %p103
        %s181 = smul.u32 8, %s17
        %p182 = scmp.lt.s32.totalorder %s181, 31
        %s183 = scalar_select %p182, %s181, 31
        %s184 = smul.addr %s183, 8
        %s185 = scalar_lea.vmem %s3, %s184
        %s186 = smul.u32 8, %s17
        %s187 = smul.u32 8, %s17
        %p188 = scmp.lt.s32.totalorder %s187, 31
        %s189 = scalar_select %p188, %s187, 31
        %s190 = smul.addr %s189, 8
        %s191 = scalar_lea.vmem %s3, %s190
        %s192 = smul.u32 8, %s17
        %v193 = vld [vmem:[%s163] sm:$0xff]
        %v194 = vld [vmem:[%s163 + $0x8] sm:$0xff]
        %v195 = vld [vmem:[%s163 + $0x10] sm:$0xff]
        %v196 = vld [vmem:[%s163 + $0x18] sm:$0xff]
        %v197 = vld [vmem:[%s163 + $0x20] sm:$0xff]
        %v198 = vld [vmem:[%s163 + $0x28] sm:$0xff]
        %v199 = vld [vmem:[%s163 + $0x30] sm:$0xff]
        %v200 = vld [vmem:[%s163 + $0x38] sm:$0xff]
        %v201 = vld [vmem:[%s1] sm:$0xff]
        %v202 = vld [vmem:[%s1 + $0x8] sm:$0xff]
        %v203 = vld [vmem:[%s1 + $0x10] sm:$0xff]
        %v204 = vld [vmem:[%s1 + $0x18] sm:$0xff]
        %v205 = vld [vmem:[%s1 + $0x20] sm:$0xff]
        %v206 = vld [vmem:[%s1 + $0x28] sm:$0xff]
        %v207 = vld [vmem:[%s1 + $0x30] sm:$0xff]
        %v208 = vld [vmem:[%s1 + $0x38] sm:$0xff]
        %v209 = vld [vmem:[%s1 + $0x40] sm:$0xff]
        %v210 = vld [vmem:[%s1 + $0x48] sm:$0xff]
        %v211 = vld [vmem:[%s1 + $0x50] sm:$0xff]
        %v212 = vld [vmem:[%s1 + $0x58] sm:$0xff]
        %v213 = vld [vmem:[%s1 + $0x60] sm:$0xff]
        %v214 = vld [vmem:[%s1 + $0x68] sm:$0xff]
        %v215 = vld [vmem:[%s1 + $0x70] sm:$0xff]
        %v216 = vld [vmem:[%s1 + $0x78] sm:$0xff]
        %v217 = vld [vmem:[%s2] sm:$0x1]
        %v219 = vlaneseq
        %v220 = vshrl.u32 %v219, 7
        %v221 = vsub.s32 0, %v220
        %v222 = vrot.slane %v217, %v221
        %224 = vmatprep.subr.mxu0 0.0
        %225 = vmatpush1.msra.mxu0 %v216
        %226 = vmatprep.subr.mxu0 0.0
        %227 = vmatpush1.msra.mxu0 %v215
        %228 = vmatprep.subr.mxu0 0.0
        %229 = vmatpush1.msra.mxu0 %v214
        %230 = vmatprep.subr.mxu0 0.0
        %231 = vmatpush1.msra.mxu0 %v213
        %232 = vmatprep.subr.mxu0 0.0
        %233 = vmatpush1.msra.mxu0 %v212
        %234 = vmatprep.subr.mxu0 0.0
        %235 = vmatpush1.msra.mxu0 %v211
        %236 = vmatprep.subr.mxu0 0.0
        %237 = vmatpush1.msra.mxu0 %v210
        %238 = vmatprep.subr.mxu0 0.0
        %239 = vmatpush1.msra.mxu0 %v209
        %240 = vmatprep.subr.mxu0 0.0
        %241 = vmatpush1.msra.mxu0 %v208
        %242 = vmatprep.subr.mxu0 0.0
        %243 = vmatpush1.msra.mxu0 %v207
        %244 = vmatprep.subr.mxu0 0.0
        %245 = vmatpush1.msra.mxu0 %v206
        %246 = vmatprep.subr.mxu0 0.0
        %247 = vmatpush1.msra.mxu0 %v205
        %248 = vmatprep.subr.mxu0 0.0
        %249 = vmatpush1.msra.mxu0 %v204
        %250 = vmatprep.subr.mxu0 0.0
        %251 = vmatpush1.msra.mxu0 %v203
        %252 = vmatprep.subr.mxu0 0.0
        %253 = vmatpush1.msra.mxu0 %v202
        %254 = vmatprep.subr.mxu0 0.0
        %255 = vmatpush1.msra.mxu0 %v201
        %256 = vmatprep.subr.mxu0 0.0
        %257 = vmatpush2.msra.mxu0 0.0
        %258 = vmatprep.subr.mxu0 0.0
        %259 = vmatpush2.msra.mxu0 0.0
        %260 = vmatprep.subr.mxu0 0.0
        %261 = vmatpush2.msra.mxu0 0.0
        %262 = vmatprep.subr.mxu0 0.0
        %263 = vmatpush2.msra.mxu0 0.0
        %264 = vmatprep.subr.mxu0 0.0
        %265 = vmatpush2.msra.mxu0 0.0
        %266 = vmatprep.subr.mxu0 0.0
        %267 = vmatpush2.msra.mxu0 0.0
        %268 = vmatprep.subr.mxu0 0.0
        %269 = vmatpush2.msra.mxu0 0.0
        %270 = vmatprep.subr.mxu0 0.0
        %271 = vmatpush2.msra.mxu0 0.0
        %272 = vmatprep.subr.mxu0 0.0
        %273 = vmatpush2.msra.mxu0 0.0
        %274 = vmatprep.subr.mxu0 0.0
        %275 = vmatpush2.msra.mxu0 0.0
        %276 = vmatprep.subr.mxu0 0.0
        %277 = vmatpush2.msra.mxu0 0.0
        %278 = vmatprep.subr.mxu0 0.0
        %279 = vmatpush2.msra.mxu0 0.0
        %280 = vmatprep.subr.mxu0 0.0
        %281 = vmatpush2.msra.mxu0 0.0
        %282 = vmatprep.subr.mxu0 0.0
        %283 = vmatpush2.msra.mxu0 0.0
        %284 = vmatprep.subr.mxu0 0.0
        %285 = vmatpush2.msra.mxu0 0.0
        %286 = vmatprep.subr.mxu0 0.0
        %287 = vmatpush2.msra.mxu0 0.0
        %288 = vmatprep.mubr.f32.mxu0 0.0
        %289 = vmatmul.mubr.f32.gmra.mxu0 %v193
        %v290 = vpop.f32.mrf.mxu0
        %v291 = vadd.f32 %v222, %v290
        %v292 = vpop.f32.mrf.mxu0
        %293 = vmatprep.mubr.f32.mxu0 0.0
        %294 = vmatmul.mubr.f32.gmra.mxu0 %v194
        %v295 = vpop.f32.mrf.mxu0
        %v296 = vadd.f32 %v222, %v295
        %v297 = vpop.f32.mrf.mxu0
        %298 = vmatprep.mubr.f32.mxu0 0.0
        %299 = vmatmul.mubr.f32.gmra.mxu0 %v195
        %v300 = vpop.f32.mrf.mxu0
        %v301 = vadd.f32 %v222, %v300
        %v302 = vpop.f32.mrf.mxu0
        %303 = vmatprep.mubr.f32.mxu0 0.0
        %304 = vmatmul.mubr.f32.gmra.mxu0 %v196
        %v305 = vpop.f32.mrf.mxu0
        %v306 = vadd.f32 %v222, %v305
        %v307 = vpop.f32.mrf.mxu0
        %308 = vmatprep.mubr.f32.mxu0 0.0
        %309 = vmatmul.mubr.f32.gmra.mxu0 %v197
        %v310 = vpop.f32.mrf.mxu0
        %v311 = vadd.f32 %v222, %v310
        %v312 = vpop.f32.mrf.mxu0
        %313 = vmatprep.mubr.f32.mxu0 0.0
        %314 = vmatmul.mubr.f32.gmra.mxu0 %v198
        %v315 = vpop.f32.mrf.mxu0
        %v316 = vadd.f32 %v222, %v315
        %v317 = vpop.f32.mrf.mxu0
        %318 = vmatprep.mubr.f32.mxu0 0.0
        %319 = vmatmul.mubr.f32.gmra.mxu0 %v199
        %v320 = vpop.f32.mrf.mxu0
        %v321 = vadd.f32 %v222, %v320
        %v322 = vpop.f32.mrf.mxu0
        %323 = vmatprep.mubr.f32.mxu0 0.0
        %324 = vmatmul.mubr.f32.gmra.mxu0 %v200
        %v325 = vpop.f32.mrf.mxu0
        %v326 = vadd.f32 %v222, %v325
        %v327 = vpop.f32.mrf.mxu0
        %328 = vdwg.mxu0
        %vm329 = vcmask 457728
        %330 = vst.msk [vmem:[%s191] sm:$0xff] %vm329, %v291
        %331 = vst.msk [vmem:[%s191 + $0x8] sm:$0xff] %vm329, %v296
        %332 = vst.msk [vmem:[%s191 + $0x10] sm:$0xff] %vm329, %v301
        %333 = vst.msk [vmem:[%s191 + $0x18] sm:$0xff] %vm329, %v306
        %334 = vst.msk [vmem:[%s191 + $0x20] sm:$0xff] %vm329, %v311
        %335 = vst.msk [vmem:[%s191 + $0x28] sm:$0xff] %vm329, %v316
        %336 = vst.msk [vmem:[%s191 + $0x30] sm:$0xff] %vm329, %v321
        %337 = vst.msk [vmem:[%s191 + $0x38] sm:$0xff] %vm329, %v326
        %s338 = smul.u32 8, %s17
        %p339 = scmp.lt.s32.totalorder %s338, 31
        %s340 = scalar_select %p339, %s338, 31
        %s341 = smul.addr %s340, 8
        %s342 = scalar_lea.vmem %s3, %s341
        // Predicated region
        $region37: #{tpu_custom_call.1} parent=31 // pred_check
          %p343 = pneg %p103
        $region38: #{tpu_custom_call.1} parent=31 // pred_check_branch
          %345 = sbr.rel (%p343) target = $region40
        $region39: #{tpu_custom_call.1} parent=31 // pred_region
          %s346 = smul.u32 8, %s17
        $region40: #{tpu_custom_call.1} parent=31 // pred_fallthru
          _
      $region32: #{tpu_custom_call.1} parent=5 // pred_fallthru
        _
      %p347 = scmp.le.s32.totalorder 2, %s12
      // Predicated region
      $region41: #{tpu_custom_call.1} parent=5 // pred_check
        %p348 = pneg %p347
      $region42: #{tpu_custom_call.1} parent=5 // pred_check_branch
        %350 = sbr.rel (%p348) target = $region44
      $region43: #{tpu_custom_call.1} parent=5 // pred_region
        %s351 = ssub.s32 %s12, 2
        // Predicated region
        $region45: #{tpu_custom_call.1} parent=43 // pred_check
          %p352 = pneg %p109
        $region46: #{tpu_custom_call.1} parent=43 // pred_check_branch
          %354 = sbr.rel (%p352) target = $region48
        $region47: #{tpu_custom_call.1} parent=43 // pred_region
          %s355 = smul.u32 8, %s18
          %p356 = scmp.lt.s32.totalorder %s355, 31
          %s357 = scalar_select %p356, %s355, 31
          %s358 = smul.addr %s357, 8
          %s359 = scalar_lea.vmem %s3, %s358
        $region48: #{tpu_custom_call.1} parent=43 // pred_fallthru
          _
      $region44: #{tpu_custom_call.1} parent=5 // pred_fallthru
        _
    $region6: #{tpu_custom_call.1} parent=1 // loop_footer
      %s16 = sadd.s32 1, %s12
    $region7: #{tpu_custom_call.1} parent=1 // loop_footer_branch
      %11 = sbr.rel target = $region3
    $region8: #{tpu_custom_call.1} parent=1 // loop_exit
      _
    %360 = vsyncpa [#allocation3], 1
    %s361 = scalar_lea.sflag [#allocation3], 1
    %362 = vsyncpa %s361, 1

</llo_original>
